<compile_context>
chip_gen: v7x
topology: tpu7x:2x2x1
jax: 0.10.0
libtpu: 0.0.40
codegen_flags: <defaults>
</compile_context>

<pallas_src>
import functools

import jax
import jax.numpy as jnp
from jax import lax
from jax.experimental import pallas as pl
from jax.experimental.pallas import tpu as pltpu

KN_CELLS = 50          # knCells in the reference module
TILE_B_TARGET = 8192   # target batch rows per grid step (~1.6 MiB f32 of kc)
CHUNK_ROWS = 512       # rows per inner-loop chunk (64 kc vregs at f32)
SPLIT_MIN_ROWS = 4096  # above this, force >= 2 grid steps (v7x has 2 TensorCores)


def _round_up(x, m):
    return ((x + m - 1) // m) * m


def _update_rows(kc, state, w_row, bias, dt_tau):
    """Per-row update: state*(1-dt/tau) + dt/tau*relu(kc @ w + bias)."""
    # VPU multiply (lane-aligned weight) + XLU cross-lane reduce over K.
    kc_value = jnp.sum(kc.astype(jnp.float32) * w_row, axis=1, keepdims=True)
    act = jnp.maximum(kc_value + bias, 0.0)
    return state * (1.0 - dt_tau) + dt_tau * act


def apl_cell_kernel(scalar_ref, kc_ref, w_ref, state_ref, out_ref, *, chunk_rows):
    # scalar_ref: SMEM (2,)          [bias, dt/tau]  runtime scalars (no recompiles)
    # kc_ref:     VMEM (tile_b, K)   kc_inputs tile, natural layout (f32 or bf16)
    # w_ref:      VMEM (1, K)        kc_weight row, resident across all grid steps
    # state_ref:  VMEM (tile_b, 1)   current state tile
    # out_ref:    VMEM (tile_b, 1)   new state tile
    bias = scalar_ref[0]
    dt_tau = scalar_ref[1]
    w_row = w_ref[...].astype(jnp.float32)        # (1, K), lane-aligned with kc

    tile_b = kc_ref.shape[0]
    n_chunks = tile_b // chunk_rows               # static python int

    if n_chunks <= 1:
        # Small tile: process the whole block with static (full-ref) indexing.
        out_ref[...] = _update_rows(kc_ref[...], state_ref[...],
                                    w_row, bias, dt_tau)
    else:
        # Large tile: chunked loop bounds live vregs and kernel code size.
        def body(c, carry):
            r0 = pl.multiple_of(c * chunk_rows, chunk_rows)
            rows = pl.ds(r0, chunk_rows)
            out_ref[rows, :] = _update_rows(kc_ref[rows, :], state_ref[rows, :],
                                            w_row, bias, dt_tau)
            return carry

        lax.fori_loop(0, n_chunks, body, 0)


def apl_cell(state, kc_inputs, kc_weight, bias, tau, dt):
    """Pallas-backed APLCell.forward.

    state:     [B, 1] f32
    kc_inputs: [B, K] f32 (or bf16 from an upstream producer)
    kc_weight: [K, 1] f32
    bias:      [1]    f32
    tau, dt:   scalars (runtime values; passed via SMEM, no recompile)
    """
    B = state.shape[0]
    K = kc_inputs.shape[1]

    # ---- adaptive batch tiling (no host-side padding or relayout) ----
    if B >= 8:
        tile_b = min(TILE_B_TARGET, (B // 8) * 8)        # multiple of 8, <= B
        if (B // 8) * 8 > SPLIT_MIN_ROWS:                # keep >=2 steps for v7x
            tile_b = min(tile_b, _round_up(-(-B // 2), 8))
        chunk = min(CHUNK_ROWS, tile_b)
        tile_b = (tile_b // chunk) * chunk               # multiple of chunk, <= B
    else:
        tile_b = B                                       # tiny batch: one full block
        chunk = B
    n_tiles = pl.cdiv(B, tile_b)                         # last block may be partial

    state_f = state.astype(jnp.float32)                  # no reshape, no pad
    w_row = kc_weight.reshape(1, K).astype(jnp.float32)  # free metadata reshape
    dt_tau = jnp.asarray(dt, jnp.float32) / jnp.asarray(tau, jnp.float32)
    scalars = jnp.concatenate(
        [jnp.asarray(bias, jnp.float32).reshape(1), dt_tau.reshape(1)])

    kernel = functools.partial(apl_cell_kernel, chunk_rows=chunk)

    return pl.pallas_call(
        kernel,
        out_shape=jax.ShapeDtypeStruct((B, 1), jnp.float32),
        grid=(n_tiles,),
        in_specs=[
            pl.BlockSpec(memory_space=pltpu.MemorySpace.SMEM),  # [bias, dt/tau]
            pl.BlockSpec((tile_b, K), lambda i: (i, 0)),        # kc_inputs (natural)
            pl.BlockSpec((1, K), lambda i: (0, 0)),             # weight row (resident)
            pl.BlockSpec((tile_b, 1), lambda i: (i, 0)),        # state
        ],
        out_specs=pl.BlockSpec((tile_b, 1), lambda i: (i, 0)),
        compiler_params=pltpu.CompilerParams(
            dimension_semantics=("parallel",),
            vmem_limit_bytes=48 * 1024 * 1024,
        ),
    )(scalars, kc_inputs, w_row, state_f)


if __name__ == "__main__":
    key = jax.random.PRNGKey(0)
    k_state, k_kc, k_state2, k_kc2 = jax.random.split(key, 4)

    tau, dt = 1.0, 0.5
    # Deterministic parameters (as in __init__: ones weight, -0.5 bias).
    kc_weight = jnp.ones((KN_CELLS, 1), dtype=jnp.float32)
    bias = jnp.array([-0.5], dtype=jnp.float32)

    def reference(state, kc_inputs):
        dt_tau = jnp.float32(dt) / jnp.float32(tau)
        kc_value = jnp.matmul(kc_inputs, kc_weight,
                              precision=jax.lax.Precision.HIGHEST)
        return state * (1.0 - dt_tau) + dt_tau * jnp.maximum(kc_value + bias, 0.0)

    # Small-batch path (single minimal block, no inner loop).
    B = 8
    state = jax.random.normal(k_state, (B, 1), dtype=jnp.float32)
    kc_inputs = jax.random.normal(k_kc, (B, KN_CELLS), dtype=jnp.float32)
    out = jax.block_until_ready(apl_cell(state, kc_inputs, kc_weight, bias, tau, dt))
    ref = reference(state, kc_inputs)
    assert out.shape == ref.shape, "shape mismatch vs reference (B=8)"
    assert jnp.allclose(out, ref, atol=1e-5, rtol=1e-5), "mismatch vs reference (B=8)"

    # Larger batch: exercises multi-tile grid, chunked inner loop and the
    # partial (boundary-clamped) last block -- still tiny (2000 x 50 f32).
    B2 = 2000
    state2 = jax.random.normal(k_state2, (B2, 1), dtype=jnp.float32)
    kc_inputs2 = jax.random.normal(k_kc2, (B2, KN_CELLS), dtype=jnp.float32)
    out2 = jax.block_until_ready(apl_cell(state2, kc_inputs2, kc_weight, bias, tau, dt))
    ref2 = reference(state2, kc_inputs2)
    assert out2.shape == ref2.shape, "shape mismatch vs reference (B=2000)"
    assert jnp.allclose(out2, ref2, atol=1e-5, rtol=1e-5), "mismatch vs reference (B=2000)"

    print("KERNEL_OK")
</pallas_src>

<mosaic_0001>
module attributes {stable_mosaic.version = 11 : i64} {
  func.func @apl_cell_kernel(%arg0: i32, %arg1: memref<2xf32, #tpu.memory_space<smem>>, %arg2: memref<8x50xf32, #tpu.memory_space<vmem>>, %arg3: memref<1x50xf32, #tpu.memory_space<vmem>>, %arg4: memref<8x1xf32, #tpu.memory_space<vmem>>, %arg5: memref<8x1xf32, #tpu.memory_space<vmem>>) attributes {dimension_semantics = [#tpu.dimension_semantics<parallel>], iteration_bounds = array<i64: 1>, scalar_prefetch = 0 : i64, scratch_operands = 0 : i64, tpu.core_type = #tpu.core_type<tc>, window_params = [{transform_indices = @transform_0, window_bounds = array<i64: 2>}, {transform_indices = @transform_1, window_bounds = array<i64: 8, 50>}, {pipeline_mode = #tpu.pipeline_mode<synchronous>, transform_indices = @transform_2, window_bounds = array<i64: 1, 50>}, {transform_indices = @transform_3, window_bounds = array<i64: 8, 1>}, {transform_indices = @transform_4, window_bounds = array<i64: 8, 1>}]} {
    %c0 = arith.constant 0 : index
    %0 = memref.load %arg1[%c0] : memref<2xf32, #tpu.memory_space<smem>>
    %c1 = arith.constant 1 : index
    %1 = memref.load %arg1[%c1] : memref<2xf32, #tpu.memory_space<smem>>
    %c0_0 = arith.constant 0 : index
    %c0_1 = arith.constant 0 : index
    %2 = vector.load %arg3[%c0_0, %c0_1] : memref<1x50xf32, #tpu.memory_space<vmem>>, vector<1x50xf32>
    %c0_2 = arith.constant 0 : index
    %c0_3 = arith.constant 0 : index
    %3 = vector.load %arg2[%c0_2, %c0_3] : memref<8x50xf32, #tpu.memory_space<vmem>>, vector<8x50xf32>
    %c0_4 = arith.constant 0 : index
    %c0_5 = arith.constant 0 : index
    %4 = vector.load %arg4[%c0_4, %c0_5] : memref<8x1xf32, #tpu.memory_space<vmem>>, vector<8x1xf32>
    %5 = vector.broadcast %2 : vector<1x50xf32> to vector<8x50xf32>
    %6 = arith.mulf %3, %5 : vector<8x50xf32>
    %cst = arith.constant dense<0.000000e+00> : vector<8xf32>
    %7 = vector.multi_reduction <add>, %6, %cst [1] : vector<8x50xf32> to vector<8xf32>
    %8 = vector.shape_cast %7 : vector<8xf32> to vector<8x1xf32>
    %9 = vector.broadcast %0 : f32 to vector<8x1xf32>
    %10 = arith.addf %8, %9 : vector<8x1xf32>
    %cst_6 = arith.constant 0.000000e+00 : f32
    %11 = vector.broadcast %cst_6 : f32 to vector<8x1xf32>
    %12 = arith.maximumf %10, %11 : vector<8x1xf32>
    %cst_7 = arith.constant 1.000000e+00 : f32
    %13 = arith.subf %cst_7, %1 : f32
    %14 = vector.broadcast %13 : f32 to vector<8x1xf32>
    %15 = arith.mulf %4, %14 : vector<8x1xf32>
    %16 = vector.broadcast %1 : f32 to vector<8x1xf32>
    %17 = arith.mulf %16, %12 : vector<8x1xf32>
    %18 = arith.addf %15, %17 : vector<8x1xf32>
    %c0_8 = arith.constant 0 : index
    %c0_9 = arith.constant 0 : index
    %19 = vector.load %arg5[%c0_8, %c0_9] : memref<8x1xf32, #tpu.memory_space<vmem>>, vector<8x1xf32>
    tpu.vector_store %arg5[%c0_8, %c0_9], %18 {strides = array<i32>} : memref<8x1xf32, #tpu.memory_space<vmem>>, vector<8x1xf32>,
    return
  }
  func.func @transform_0(%arg0: i32) -> i32 {
    %c0_i32 = arith.constant 0 : i32
    %c0_i32_0 = arith.constant 0 : i32
    return %c0_i32 : i32
  }
  func.func @transform_1(%arg0: i32) -> (i32, i32) {
    %c0_i32 = arith.constant 0 : i32
    %c0_i32_0 = arith.constant 0 : i32
    return %arg0, %c0_i32 : i32, i32
  }
  func.func @transform_2(%arg0: i32) -> (i32, i32) {
    %c0_i32 = arith.constant 0 : i32
    %c0_i32_0 = arith.constant 0 : i32
    %c0_i32_1 = arith.constant 0 : i32
    return %c0_i32, %c0_i32_0 : i32, i32
  }
  func.func @transform_3(%arg0: i32) -> (i32, i32) {
    %c0_i32 = arith.constant 0 : i32
    %c0_i32_0 = arith.constant 0 : i32
    return %arg0, %c0_i32 : i32, i32
  }
  func.func @transform_4(%arg0: i32) -> (i32, i32) {
    %c0_i32 = arith.constant 0 : i32
    %c0_i32_0 = arith.constant 0 : i32
    return %arg0, %c0_i32 : i32, i32
  }
}

</mosaic_0001>

<llo_original>
// kernel: tpu_custom_call.1
$region0: #{tpu_custom_call.1}
  #allocation0 [shape = 'u32[]', space=smem, size = 0x4, offset = 0x4, fixed_abs, tag = 'smem constant byte address 0x4 - core index']
  #allocation1 [shape = 'u32[144,128]{1,0:T(1,128)}', space=vmem, size = 0x12000, scoped, tag = 'internal scratch']
  %s0 = inlined_call_operand.vmem [shape: f32[2], index: 0, kind: input, shape index: {}]
  %s1 = inlined_call_operand.vmem [shape: f32[8,50], index: 1, kind: input, shape index: {}]
  %s2 = inlined_call_operand.vmem [shape: f32[1,50], index: 2, kind: input, shape index: {}]
  %s3 = inlined_call_operand.vmem [shape: f32[8,1], index: 3, kind: input, shape index: {}]
  %s4 = inlined_call_operand.vmem [shape: f32[8,1], index: 4, kind: output, shape index: {}]
  %s5 = sld [smem:[#allocation0]]
  $region30: #{tpu_custom_call.1} parent=0
    _
  %s7 = ssub.s32 1, %s5
  %s8 = scalar_select 0, %s7, %s5
  $region1: #{tpu_custom_call.1} parent=0
    #allocation2 [shape = 'u8[512]{0}', space=smem, size = 0x200, scoped, tag = 'input window, operand 0, single buffered']
    #allocation3 [shape = 's32[1]{0}', space=sflag, size = 0x4, scoped, tag = 'scoped memory for tpu_custom_call.1']
    %9 = vsyncpa [#allocation3], 0
    // Predicated region
    $region2: #{tpu_custom_call.1} parent=1 // pred_check
      _
    $region3: #{tpu_custom_call.1} parent=1 // pred_check_branch
      %11 = sbr.rel (0) target = $region5
    $region4: #{tpu_custom_call.1} parent=1 // pred_region
      %s13 = ssub.s32 16, 16
      %14 = vsyncadd [#allocation3], %s13
      %s16 = sshll.u32 %s0, 4
      %s17 = int_to_ptr.vmem [resolvable:$true] %s16
      %19 = dma.vmem_to_smem %s17, 16, [#allocation2], [#allocation3]
    $region5: #{tpu_custom_call.1} parent=1 // pred_fallthru
      _
    // Predicated region
    $region6: #{tpu_custom_call.1} parent=1 // pred_check
      _
    $region7: #{tpu_custom_call.1} parent=1 // pred_check_branch
      %21 = sbr.rel (0) target = $region9
    $region8: #{tpu_custom_call.1} parent=1 // pred_region
      _
    $region9: #{tpu_custom_call.1} parent=1 // pred_fallthru
      _
    // Predicated region
    $region10: #{tpu_custom_call.1} parent=1 // pred_check
      _
    $region11: #{tpu_custom_call.1} parent=1 // pred_check_branch
      %23 = sbr.rel (0) target = $region13
    $region12: #{tpu_custom_call.1} parent=1 // pred_region
      _
    $region13: #{tpu_custom_call.1} parent=1 // pred_fallthru
      _
    // Predicated region
    $region14: #{tpu_custom_call.1} parent=1 // pred_check
      _
    $region15: #{tpu_custom_call.1} parent=1 // pred_check_branch
      %25 = sbr.rel (0) target = $region17
    $region16: #{tpu_custom_call.1} parent=1 // pred_region
      _
    $region17: #{tpu_custom_call.1} parent=1 // pred_fallthru
      _
    // Predicated region
    $region18: #{tpu_custom_call.1} parent=1 // pred_check
      _
    $region19: #{tpu_custom_call.1} parent=1 // pred_check_branch
      %27 = sbr.rel (0) target = $region21
    $region20: #{tpu_custom_call.1} parent=1 // pred_region
      %28 = dma.done [#allocation3], 16
    $region21: #{tpu_custom_call.1} parent=1 // pred_fallthru
      _
    %29 = sfence
    %s30 = sld [smem:[#allocation2]]
    %s31 = sld [smem:[#allocation2 + $0x1]]
    %v32 = vld [vmem:[%s2] sm:$0x1]
    %v33 = vld [vmem:[%s1] sm:$0xff]
    %v34 = vld [vmem:[%s3] sm:$0xff]
    %v36 = vlaneseq
    %v37 = vshrl.u32 %v36, 7
    %v38 = vsub.s32 0, %v37
    %v39 = vrot.slane %v32, %v38
    %v41 = vmul.f32 %v33, %v39
    %vm42 = vcmask 408576
    %v43 = vsel %vm42, %v41, 0.0
    %44 = vadd.xlane.f32.xlu0 %v43
    %v45 = vpop.xlane.xlu0 %44
    %v46 = vstv %s30
    %v47 = vadd.f32 %v45, %v46
    %v48 = vmax.f32 %v47, 0.0
    %s49 = ssub.f32 1.0, %s31
    %v50 = vstv %s49
    %v51 = vmul.f32 %v34, %v50
    %v52 = vstv %s31
    %v53 = vmul.f32 %v52, %v48
    %v54 = vadd.f32 %v51, %v53
    %vm55 = vcmask 7168
    %56 = vst.msk [vmem:[%s4] sm:$0xff] %vm55, %v54
    // Predicated region
    $region22: #{tpu_custom_call.1} parent=1 // pred_check
      _
    $region23: #{tpu_custom_call.1} parent=1 // pred_check_branch
      %58 = sbr.rel (0) target = $region25
    $region24: #{tpu_custom_call.1} parent=1 // pred_region
      _
    $region25: #{tpu_custom_call.1} parent=1 // pred_fallthru
      _
    // Predicated region
    $region26: #{tpu_custom_call.1} parent=1 // pred_check
      _
    $region27: #{tpu_custom_call.1} parent=1 // pred_check_branch
      %60 = sbr.rel (0) target = $region29
    $region28: #{tpu_custom_call.1} parent=1 // pred_region
      _
    $region29: #{tpu_custom_call.1} parent=1 // pred_fallthru
      _
    %61 = vsyncpa [#allocation3], 1

</llo_original>
